<compile_context>
chip_gen: v5e
topology: v5e:2x2
jax: 0.10.0
libtpu: 0.0.40
codegen_flags: <defaults>
</compile_context>

<pallas_src>
import functools

import jax
import jax.numpy as jnp
from jax import lax
from jax.experimental import pallas as pl
from jax.experimental.pallas import tpu as pltpu


def _round_up(x, m):
    return (x + m - 1) // m * m


def gru_kernel(x_ref,      # (t_chunk*B_pad, I)   time-major chunk, row = t*B_pad + b
               w_ih_ref,   # (I, 3*H_pad)         fused input weights  [r | z | n]
               w_hh_ref,   # (H_pad, 3*H_pad)     fused hidden weights [r | z | n]
               b_i_ref,    # (1, 3*H_pad)         [b_ih_r+b_hh_r | b_ih_z+b_hh_z | b_ih_n]
               b_hn_ref,   # (1, H_pad)           hidden bias of n gate (stays inside r*(...))
               w_fc_ref,   # (H_pad, O_pad)
               b_fc_ref,   # (1, O_pad)
               o_ref,      # (B_pad, O_pad)
               gi_ref,     # VMEM scratch (t_chunk*B_pad, 3*H_pad)
               h_ref,      # VMEM scratch (B_pad, H_pad) -- hidden state carried across chunks
               *, t_total, unroll):
    c = pl.program_id(0)
    n_chunks = pl.num_programs(0)
    b_pad, h_pad = h_ref.shape
    t_chunk = x_ref.shape[0] // b_pad
    needs_mask = (t_total % t_chunk) != 0   # static: only if T was padded up to a multiple

    # ---- init hidden state on the first chunk ----
    @pl.when(c == 0)
    def _():
        h_ref[...] = jnp.zeros_like(h_ref)

    # ---- phase 1: fused input projection for the whole chunk (h-independent) ----
    gi_ref[...] = (jnp.dot(x_ref[...], w_ih_ref[...], preferred_element_type=jnp.float32)
                   + b_i_ref[...])

    # ---- phase 2: serial recurrence over the chunk ----
    b_hn = jnp.broadcast_to(b_hn_ref[...], (b_pad, h_pad))   # hoisted out of the loop

    def step(t, h):
        gi_t = gi_ref[pl.ds(t * b_pad, b_pad), :]             # sublane-aligned offset
        gh = jnp.dot(h, w_hh_ref[...], preferred_element_type=jnp.float32)   # one MXU push
        r = jax.nn.sigmoid(gi_t[:, 0:h_pad] + gh[:, 0:h_pad])
        z = jax.nn.sigmoid(gi_t[:, h_pad:2 * h_pad] + gh[:, h_pad:2 * h_pad])
        n = jnp.tanh(gi_t[:, 2 * h_pad:] + r * (gh[:, 2 * h_pad:] + b_hn))
        h_new = (1.0 - z) * n + z * h
        if needs_mask:   # padded (beyond-T) timesteps must not update h
            h_new = jnp.where(c * t_chunk + t < t_total, h_new, h)
        return h_new

    h = lax.fori_loop(0, t_chunk, step, h_ref[...], unroll=unroll)
    h_ref[...] = h

    # ---- phase 3: fc + sigmoid on the final hidden state (last chunk only) ----
    @pl.when(c == n_chunks - 1)
    def _():
        logits = jnp.dot(h, w_fc_ref[...], preferred_element_type=jnp.float32) + b_fc_ref[...]
        o_ref[...] = jax.nn.sigmoid(logits)


def gru_model_forward(x_btI, params, *, t_chunk=None):
    """x_btI: (B, T, I) float32 (PyTorch batch_first layout). Returns (B, O)."""
    B, T, I = x_btI.shape
    H = params["w_hh_r_t"].shape[0]
    O = params["w_fc_t"].shape[1]

    B_pad = _round_up(B, 8)
    H_pad = _round_up(H, 128)
    O_pad = _round_up(O, 128)

    if t_chunk is None:
        t_chunk = min(T, 16)
    T_pad = _round_up(T, t_chunk)
    n_chunks = T_pad // t_chunk

    # time-major, zero-padded x, flattened to (T_pad*B_pad, I) with row = t*B_pad + b
    x_tm = jnp.zeros((T_pad, B_pad, I), jnp.float32)
    x_tm = x_tm.at[:T, :B, :].set(jnp.transpose(x_btI, (1, 0, 2)))
    x_flat = x_tm.reshape(T_pad * B_pad, I)

    def pad2(a, rows, cols):
        return jnp.zeros((rows, cols), jnp.float32).at[:a.shape[0], :a.shape[1]].set(a)

    # fused, gate-blocked weights/biases; each gate owns its own lane-aligned H_pad block.
    w_ih = jnp.zeros((I, 3 * H_pad), jnp.float32)
    w_hh = jnp.zeros((H_pad, 3 * H_pad), jnp.float32)
    b_i = jnp.zeros((1, 3 * H_pad), jnp.float32)
    gate_w_ih = (params["w_ih_r_t"], params["w_ih_z_t"], params["w_ih_n_t"])
    gate_w_hh = (params["w_hh_r_t"], params["w_hh_z_t"], params["w_hh_n_t"])
    gate_b = (params["b_ih_r"] + params["b_hh_r"],      # r/z biases pre-folded
              params["b_ih_z"] + params["b_hh_z"],
              params["b_ih_n"])                          # n gate: only the input bias here
    for g in range(3):
        w_ih = w_ih.at[:, g * H_pad:g * H_pad + H].set(gate_w_ih[g])
        w_hh = w_hh.at[:H, g * H_pad:g * H_pad + H].set(gate_w_hh[g])
        b_i = b_i.at[:, g * H_pad:g * H_pad + H].set(gate_b[g])
    b_hn = pad2(params["b_hh_n"], 1, H_pad)
    w_fc = pad2(params["w_fc_t"], H_pad, O_pad)
    b_fc = pad2(params["b_fc"], 1, O_pad)

    # explicit VMEM budget (double-buffered inputs + scratch), with headroom; safe on v7x.
    f32 = 4
    vmem_est = f32 * (
        2 * t_chunk * B_pad * I
        + 2 * (I * 3 * H_pad + H_pad * 3 * H_pad + 3 * H_pad + H_pad + H_pad * O_pad + O_pad)
        + 2 * B_pad * O_pad
        + t_chunk * B_pad * 3 * H_pad + B_pad * H_pad
    )
    vmem_limit = int(min(max(2 * vmem_est, 32 * 1024 * 1024), 64 * 1024 * 1024))

    kernel = functools.partial(
        gru_kernel, t_total=T, unroll=True if t_chunk <= 8 else 4)

    out_padded = pl.pallas_call(
        kernel,
        out_shape=jax.ShapeDtypeStruct((B_pad, O_pad), jnp.float32),
        grid_spec=pltpu.PrefetchScalarGridSpec(
            num_scalar_prefetch=0,
            grid=(n_chunks,),
            in_specs=[
                pl.BlockSpec((t_chunk * B_pad, I), lambda c: (c, 0)),   # x streams per chunk
                pl.BlockSpec((I, 3 * H_pad), lambda c: (0, 0)),
                pl.BlockSpec((H_pad, 3 * H_pad), lambda c: (0, 0)),
                pl.BlockSpec((1, 3 * H_pad), lambda c: (0, 0)),
                pl.BlockSpec((1, H_pad), lambda c: (0, 0)),
                pl.BlockSpec((H_pad, O_pad), lambda c: (0, 0)),
                pl.BlockSpec((1, O_pad), lambda c: (0, 0)),
            ],
            out_specs=pl.BlockSpec((B_pad, O_pad), lambda c: (0, 0)),
            scratch_shapes=[
                pltpu.VMEM((t_chunk * B_pad, 3 * H_pad), jnp.float32),  # gi stage
                pltpu.VMEM((B_pad, H_pad), jnp.float32),                # carried hidden state
            ],
        ),
        compiler_params=pltpu.CompilerParams(
            dimension_semantics=("arbitrary",),       # chunks are sequentially dependent via h
            vmem_limit_bytes=vmem_limit,
        ),
    )(x_flat, w_ih, w_hh, b_i, b_hn, w_fc, b_fc)

    return out_padded[:B, :O]


def init_params(key, input_size, hidden_size, output_size):
    """Deterministic init mimicking PyTorch's U(-1/sqrt(H), 1/sqrt(H)); weights stored
    transposed (right-multiply form) and split per gate [r, z, n]."""
    ks = jax.random.split(key, 14)
    k = 1.0 / jnp.sqrt(hidden_size)
    u = lambda kk, shape: jax.random.uniform(kk, shape, jnp.float32, -k, k)
    I, H, O = input_size, hidden_size, output_size
    return {
        "w_ih_r_t": u(ks[0], (I, H)), "w_ih_z_t": u(ks[1], (I, H)), "w_ih_n_t": u(ks[2], (I, H)),
        "w_hh_r_t": u(ks[3], (H, H)), "w_hh_z_t": u(ks[4], (H, H)), "w_hh_n_t": u(ks[5], (H, H)),
        "b_ih_r": u(ks[6], (1, H)), "b_ih_z": u(ks[7], (1, H)), "b_ih_n": u(ks[8], (1, H)),
        "b_hh_r": u(ks[9], (1, H)), "b_hh_z": u(ks[10], (1, H)), "b_hh_n": u(ks[11], (1, H)),
        "w_fc_t": u(ks[12], (H, O)), "b_fc": u(ks[13], (1, O)),
    }


def reference_forward(x_btI, params):
    """Pure-JAX reference of the PyTorch GRUModel forward (gate order r, z, n)."""
    B, T, I = x_btI.shape
    H = params["w_hh_r_t"].shape[0]

    def step(h, x_t):
        r = jax.nn.sigmoid(x_t @ params["w_ih_r_t"] + params["b_ih_r"]
                           + h @ params["w_hh_r_t"] + params["b_hh_r"])
        z = jax.nn.sigmoid(x_t @ params["w_ih_z_t"] + params["b_ih_z"]
                           + h @ params["w_hh_z_t"] + params["b_hh_z"])
        n = jnp.tanh(x_t @ params["w_ih_n_t"] + params["b_ih_n"]
                     + r * (h @ params["w_hh_n_t"] + params["b_hh_n"]))
        h_new = (1.0 - z) * n + z * h
        return h_new, None

    h0 = jnp.zeros((B, H), jnp.float32)
    h_last, _ = jax.lax.scan(step, h0, jnp.transpose(x_btI, (1, 0, 2)))
    return jax.nn.sigmoid(h_last @ params["w_fc_t"] + params["b_fc"])


if __name__ == "__main__":
    B, T, I, H, O = 2, 8, 4, 32, 1
    key = jax.random.PRNGKey(0)
    kx, kp = jax.random.split(key)
    x = jax.random.normal(kx, (B, T, I), jnp.float32)
    params = init_params(kp, I, H, O)

    # t_chunk=4 -> grid of 2 time chunks, exercising the streamed / carried-h path.
    out = gru_model_forward(x, params, t_chunk=4)
    out = jax.block_until_ready(out)

    ref = reference_forward(x, params)
    assert out.shape == (B, O)
    assert jnp.allclose(out, ref, atol=1e-5, rtol=1e-5), (out, ref)
    print("KERNEL_OK")
</pallas_src>

<mosaic_0001>
module attributes {stable_mosaic.version = 11 : i64} {
  func.func @gru_kernel(%arg0: i32, %arg1: memref<32x4xf32, #tpu.memory_space<vmem>>, %arg2: memref<4x384xf32, #tpu.memory_space<vmem>>, %arg3: memref<128x384xf32, #tpu.memory_space<vmem>>, %arg4: memref<1x384xf32, #tpu.memory_space<vmem>>, %arg5: memref<1x128xf32, #tpu.memory_space<vmem>>, %arg6: memref<128x128xf32, #tpu.memory_space<vmem>>, %arg7: memref<1x128xf32, #tpu.memory_space<vmem>>, %arg8: memref<8x128xf32, #tpu.memory_space<vmem>>, %arg9: memref<32x384xf32, #tpu.memory_space<vmem>>, %arg10: memref<8x128xf32, #tpu.memory_space<vmem>>) attributes {dimension_semantics = [#tpu.dimension_semantics<arbitrary>], iteration_bounds = array<i64: 2>, scalar_prefetch = 0 : i64, scratch_operands = 2 : i64, tpu.core_type = #tpu.core_type<tc>, window_params = [{transform_indices = @transform_0, window_bounds = array<i64: 32, 4>}, {pipeline_mode = #tpu.pipeline_mode<synchronous>, transform_indices = @transform_1, window_bounds = array<i64: 4, 384>}, {pipeline_mode = #tpu.pipeline_mode<synchronous>, transform_indices = @transform_2, window_bounds = array<i64: 128, 384>}, {pipeline_mode = #tpu.pipeline_mode<synchronous>, transform_indices = @transform_3, window_bounds = array<i64: 1, 384>}, {pipeline_mode = #tpu.pipeline_mode<synchronous>, transform_indices = @transform_4, window_bounds = array<i64: 1, 128>}, {pipeline_mode = #tpu.pipeline_mode<synchronous>, transform_indices = @transform_5, window_bounds = array<i64: 128, 128>}, {pipeline_mode = #tpu.pipeline_mode<synchronous>, transform_indices = @transform_6, window_bounds = array<i64: 1, 128>}, {pipeline_mode = #tpu.pipeline_mode<synchronous>, transform_indices = @transform_7, window_bounds = array<i64: 8, 128>}]} {
    %c0_i32 = arith.constant 0 : i32
    %0 = arith.cmpi eq, %arg0, %c0_i32 : i32
    %1 = arith.extui %0 : i1 to i32
    %c0_i32_0 = arith.constant 0 : i32
    %2 = arith.cmpi ne, %1, %c0_i32_0 : i32
    scf.if %2 {
      %cst_48 = arith.constant 0.000000e+00 : f32
      %146 = vector.broadcast %cst_48 : f32 to vector<8x128xf32>
      %c0_49 = arith.constant 0 : index
      %c0_50 = arith.constant 0 : index
      %147 = vector.load %arg10[%c0_49, %c0_50] : memref<8x128xf32, #tpu.memory_space<vmem>>, vector<8x128xf32>
      tpu.vector_store %arg10[%c0_49, %c0_50], %146 {strides = array<i32>} : memref<8x128xf32, #tpu.memory_space<vmem>>, vector<8x128xf32>,
    } else {
    }
    %c0 = arith.constant 0 : index
    %c0_1 = arith.constant 0 : index
    %3 = vector.load %arg1[%c0, %c0_1] : memref<32x4xf32, #tpu.memory_space<vmem>>, vector<32x4xf32>
    %c0_2 = arith.constant 0 : index
    %c0_3 = arith.constant 0 : index
    %4 = vector.load %arg2[%c0_2, %c0_3] : memref<4x384xf32, #tpu.memory_space<vmem>>, vector<4x384xf32>
    %cst = arith.constant dense<0.000000e+00> : vector<32x384xf32>
    %5 = tpu.matmul %3, %4, %cst {dimension_numbers = #tpu.dot_dimension_numbers<[1], [0], [0], [1], [0, 0, 1, 1], [], []>} : vector<32x4xf32>, vector<4x384xf32>, vector<32x384xf32> -> vector<32x384xf32>
    %c0_4 = arith.constant 0 : index
    %c0_5 = arith.constant 0 : index
    %6 = vector.load %arg4[%c0_4, %c0_5] : memref<1x384xf32, #tpu.memory_space<vmem>>, vector<1x384xf32>
    %7 = vector.broadcast %6 : vector<1x384xf32> to vector<32x384xf32>
    %8 = arith.addf %5, %7 : vector<32x384xf32>
    %c0_6 = arith.constant 0 : index
    %c0_7 = arith.constant 0 : index
    %9 = vector.load %arg9[%c0_6, %c0_7] : memref<32x384xf32, #tpu.memory_space<vmem>>, vector<32x384xf32>
    tpu.vector_store %arg9[%c0_6, %c0_7], %8 {strides = array<i32>} : memref<32x384xf32, #tpu.memory_space<vmem>>, vector<32x384xf32>,
    %c0_8 = arith.constant 0 : index
    %c0_9 = arith.constant 0 : index
    %10 = vector.load %arg5[%c0_8, %c0_9] : memref<1x128xf32, #tpu.memory_space<vmem>>, vector<1x128xf32>
    %11 = vector.shape_cast %10 : vector<1x128xf32> to vector<1x128xf32>
    %12 = vector.broadcast %11 : vector<1x128xf32> to vector<8x128xf32>
    %c0_10 = arith.constant 0 : index
    %c0_11 = arith.constant 0 : index
    %13 = vector.load %arg10[%c0_10, %c0_11] : memref<8x128xf32, #tpu.memory_space<vmem>>, vector<8x128xf32>
    %c0_i32_12 = arith.constant 0 : i32
    %c8_i32 = arith.constant 8 : i32
    %14 = arith.muli %c0_i32_12, %c8_i32 : i32
    %15 = arith.index_cast %14 : i32 to index
    %c0_13 = arith.constant 0 : index
    %16 = vector.load %arg9[%15, %c0_13] : memref<32x384xf32, #tpu.memory_space<vmem>>, vector<8x384xf32>
    %c0_14 = arith.constant 0 : index
    %c0_15 = arith.constant 0 : index
    %17 = vector.load %arg3[%c0_14, %c0_15] : memref<128x384xf32, #tpu.memory_space<vmem>>, vector<128x384xf32>
    %cst_16 = arith.constant dense<0.000000e+00> : vector<8x384xf32>
    %18 = tpu.matmul %13, %17, %cst_16 {dimension_numbers = #tpu.dot_dimension_numbers<[1], [0], [0], [1], [0, 0, 1, 1], [], []>} : vector<8x128xf32>, vector<128x384xf32>, vector<8x384xf32> -> vector<8x384xf32>
    %19 = vector.extract_strided_slice %16 {offsets = [0, 0], sizes = [8, 128], strides = [1, 1]} : vector<8x384xf32> to vector<8x128xf32>
    %20 = vector.extract_strided_slice %18 {offsets = [0, 0], sizes = [8, 128], strides = [1, 1]} : vector<8x384xf32> to vector<8x128xf32>
    %21 = arith.addf %19, %20 : vector<8x128xf32>
    %22 = arith.negf %21 : vector<8x128xf32>
    %23 = math.exp %22 : vector<8x128xf32>
    %cst_17 = arith.constant 1.000000e+00 : f32
    %24 = vector.broadcast %cst_17 : f32 to vector<8x128xf32>
    %25 = arith.addf %24, %23 : vector<8x128xf32>
    %26 = arith.divf %24, %25 : vector<8x128xf32>
    %27 = vector.extract_strided_slice %16 {offsets = [0, 128], sizes = [8, 128], strides = [1, 1]} : vector<8x384xf32> to vector<8x128xf32>
    %28 = vector.extract_strided_slice %18 {offsets = [0, 128], sizes = [8, 128], strides = [1, 1]} : vector<8x384xf32> to vector<8x128xf32>
    %29 = arith.addf %27, %28 : vector<8x128xf32>
    %30 = arith.negf %29 : vector<8x128xf32>
    %31 = math.exp %30 : vector<8x128xf32>
    %cst_18 = arith.constant 1.000000e+00 : f32
    %32 = vector.broadcast %cst_18 : f32 to vector<8x128xf32>
    %33 = arith.addf %32, %31 : vector<8x128xf32>
    %34 = arith.divf %32, %33 : vector<8x128xf32>
    %35 = vector.extract_strided_slice %16 {offsets = [0, 256], sizes = [8, 128], strides = [1, 1]} : vector<8x384xf32> to vector<8x128xf32>
    %36 = vector.extract_strided_slice %18 {offsets = [0, 256], sizes = [8, 128], strides = [1, 1]} : vector<8x384xf32> to vector<8x128xf32>
    %37 = arith.addf %36, %12 : vector<8x128xf32>
    %38 = arith.mulf %26, %37 : vector<8x128xf32>
    %39 = arith.addf %35, %38 : vector<8x128xf32>
    %40 = math.tanh %39 : vector<8x128xf32>
    %cst_19 = arith.constant 1.000000e+00 : f32
    %41 = vector.broadcast %cst_19 : f32 to vector<8x128xf32>
    %42 = arith.subf %41, %34 : vector<8x128xf32>
    %43 = arith.mulf %42, %40 : vector<8x128xf32>
    %44 = arith.mulf %34, %13 : vector<8x128xf32>
    %45 = arith.addf %43, %44 : vector<8x128xf32>
    %c1_i32 = arith.constant 1 : i32
    %c8_i32_20 = arith.constant 8 : i32
    %46 = arith.muli %c1_i32, %c8_i32_20 : i32
    %47 = arith.index_cast %46 : i32 to index
    %c0_21 = arith.constant 0 : index
    %48 = vector.load %arg9[%47, %c0_21] : memref<32x384xf32, #tpu.memory_space<vmem>>, vector<8x384xf32>
    %c0_22 = arith.constant 0 : index
    %c0_23 = arith.constant 0 : index
    %49 = vector.load %arg3[%c0_22, %c0_23] : memref<128x384xf32, #tpu.memory_space<vmem>>, vector<128x384xf32>
    %cst_24 = arith.constant dense<0.000000e+00> : vector<8x384xf32>
    %50 = tpu.matmul %45, %49, %cst_24 {dimension_numbers = #tpu.dot_dimension_numbers<[1], [0], [0], [1], [0, 0, 1, 1], [], []>} : vector<8x128xf32>, vector<128x384xf32>, vector<8x384xf32> -> vector<8x384xf32>
    %51 = vector.extract_strided_slice %48 {offsets = [0, 0], sizes = [8, 128], strides = [1, 1]} : vector<8x384xf32> to vector<8x128xf32>
    %52 = vector.extract_strided_slice %50 {offsets = [0, 0], sizes = [8, 128], strides = [1, 1]} : vector<8x384xf32> to vector<8x128xf32>
    %53 = arith.addf %51, %52 : vector<8x128xf32>
    %54 = arith.negf %53 : vector<8x128xf32>
    %55 = math.exp %54 : vector<8x128xf32>
    %cst_25 = arith.constant 1.000000e+00 : f32
    %56 = vector.broadcast %cst_25 : f32 to vector<8x128xf32>
    %57 = arith.addf %56, %55 : vector<8x128xf32>
    %58 = arith.divf %56, %57 : vector<8x128xf32>
    %59 = vector.extract_strided_slice %48 {offsets = [0, 128], sizes = [8, 128], strides = [1, 1]} : vector<8x384xf32> to vector<8x128xf32>
    %60 = vector.extract_strided_slice %50 {offsets = [0, 128], sizes = [8, 128], strides = [1, 1]} : vector<8x384xf32> to vector<8x128xf32>
    %61 = arith.addf %59, %60 : vector<8x128xf32>
    %62 = arith.negf %61 : vector<8x128xf32>
    %63 = math.exp %62 : vector<8x128xf32>
    %cst_26 = arith.constant 1.000000e+00 : f32
    %64 = vector.broadcast %cst_26 : f32 to vector<8x128xf32>
    %65 = arith.addf %64, %63 : vector<8x128xf32>
    %66 = arith.divf %64, %65 : vector<8x128xf32>
    %67 = vector.extract_strided_slice %48 {offsets = [0, 256], sizes = [8, 128], strides = [1, 1]} : vector<8x384xf32> to vector<8x128xf32>
    %68 = vector.extract_strided_slice %50 {offsets = [0, 256], sizes = [8, 128], strides = [1, 1]} : vector<8x384xf32> to vector<8x128xf32>
    %69 = arith.addf %68, %12 : vector<8x128xf32>
    %70 = arith.mulf %58, %69 : vector<8x128xf32>
    %71 = arith.addf %67, %70 : vector<8x128xf32>
    %72 = math.tanh %71 : vector<8x128xf32>
    %cst_27 = arith.constant 1.000000e+00 : f32
    %73 = vector.broadcast %cst_27 : f32 to vector<8x128xf32>
    %74 = arith.subf %73, %66 : vector<8x128xf32>
    %75 = arith.mulf %74, %72 : vector<8x128xf32>
    %76 = arith.mulf %66, %45 : vector<8x128xf32>
    %77 = arith.addf %75, %76 : vector<8x128xf32>
    %c2_i32 = arith.constant 2 : i32
    %c8_i32_28 = arith.constant 8 : i32
    %78 = arith.muli %c2_i32, %c8_i32_28 : i32
    %79 = arith.index_cast %78 : i32 to index
    %c0_29 = arith.constant 0 : index
    %80 = vector.load %arg9[%79, %c0_29] : memref<32x384xf32, #tpu.memory_space<vmem>>, vector<8x384xf32>
    %c0_30 = arith.constant 0 : index
    %c0_31 = arith.constant 0 : index
    %81 = vector.load %arg3[%c0_30, %c0_31] : memref<128x384xf32, #tpu.memory_space<vmem>>, vector<128x384xf32>
    %cst_32 = arith.constant dense<0.000000e+00> : vector<8x384xf32>
    %82 = tpu.matmul %77, %81, %cst_32 {dimension_numbers = #tpu.dot_dimension_numbers<[1], [0], [0], [1], [0, 0, 1, 1], [], []>} : vector<8x128xf32>, vector<128x384xf32>, vector<8x384xf32> -> vector<8x384xf32>
    %83 = vector.extract_strided_slice %80 {offsets = [0, 0], sizes = [8, 128], strides = [1, 1]} : vector<8x384xf32> to vector<8x128xf32>
    %84 = vector.extract_strided_slice %82 {offsets = [0, 0], sizes = [8, 128], strides = [1, 1]} : vector<8x384xf32> to vector<8x128xf32>
    %85 = arith.addf %83, %84 : vector<8x128xf32>
    %86 = arith.negf %85 : vector<8x128xf32>
    %87 = math.exp %86 : vector<8x128xf32>
    %cst_33 = arith.constant 1.000000e+00 : f32
    %88 = vector.broadcast %cst_33 : f32 to vector<8x128xf32>
    %89 = arith.addf %88, %87 : vector<8x128xf32>
    %90 = arith.divf %88, %89 : vector<8x128xf32>
    %91 = vector.extract_strided_slice %80 {offsets = [0, 128], sizes = [8, 128], strides = [1, 1]} : vector<8x384xf32> to vector<8x128xf32>
    %92 = vector.extract_strided_slice %82 {offsets = [0, 128], sizes = [8, 128], strides = [1, 1]} : vector<8x384xf32> to vector<8x128xf32>
    %93 = arith.addf %91, %92 : vector<8x128xf32>
    %94 = arith.negf %93 : vector<8x128xf32>
    %95 = math.exp %94 : vector<8x128xf32>
    %cst_34 = arith.constant 1.000000e+00 : f32
    %96 = vector.broadcast %cst_34 : f32 to vector<8x128xf32>
    %97 = arith.addf %96, %95 : vector<8x128xf32>
    %98 = arith.divf %96, %97 : vector<8x128xf32>
    %99 = vector.extract_strided_slice %80 {offsets = [0, 256], sizes = [8, 128], strides = [1, 1]} : vector<8x384xf32> to vector<8x128xf32>
    %100 = vector.extract_strided_slice %82 {offsets = [0, 256], sizes = [8, 128], strides = [1, 1]} : vector<8x384xf32> to vector<8x128xf32>
    %101 = arith.addf %100, %12 : vector<8x128xf32>
    %102 = arith.mulf %90, %101 : vector<8x128xf32>
    %103 = arith.addf %99, %102 : vector<8x128xf32>
    %104 = math.tanh %103 : vector<8x128xf32>
    %cst_35 = arith.constant 1.000000e+00 : f32
    %105 = vector.broadcast %cst_35 : f32 to vector<8x128xf32>
    %106 = arith.subf %105, %98 : vector<8x128xf32>
    %107 = arith.mulf %106, %104 : vector<8x128xf32>
    %108 = arith.mulf %98, %77 : vector<8x128xf32>
    %109 = arith.addf %107, %108 : vector<8x128xf32>
    %c3_i32 = arith.constant 3 : i32
    %c8_i32_36 = arith.constant 8 : i32
    %110 = arith.muli %c3_i32, %c8_i32_36 : i32
    %111 = arith.index_cast %110 : i32 to index
    %c0_37 = arith.constant 0 : index
    %112 = vector.load %arg9[%111, %c0_37] : memref<32x384xf32, #tpu.memory_space<vmem>>, vector<8x384xf32>
    %c0_38 = arith.constant 0 : index
    %c0_39 = arith.constant 0 : index
    %113 = vector.load %arg3[%c0_38, %c0_39] : memref<128x384xf32, #tpu.memory_space<vmem>>, vector<128x384xf32>
    %cst_40 = arith.constant dense<0.000000e+00> : vector<8x384xf32>
    %114 = tpu.matmul %109, %113, %cst_40 {dimension_numbers = #tpu.dot_dimension_numbers<[1], [0], [0], [1], [0, 0, 1, 1], [], []>} : vector<8x128xf32>, vector<128x384xf32>, vector<8x384xf32> -> vector<8x384xf32>
    %115 = vector.extract_strided_slice %112 {offsets = [0, 0], sizes = [8, 128], strides = [1, 1]} : vector<8x384xf32> to vector<8x128xf32>
    %116 = vector.extract_strided_slice %114 {offsets = [0, 0], sizes = [8, 128], strides = [1, 1]} : vector<8x384xf32> to vector<8x128xf32>
    %117 = arith.addf %115, %116 : vector<8x128xf32>
    %118 = arith.negf %117 : vector<8x128xf32>
    %119 = math.exp %118 : vector<8x128xf32>
    %cst_41 = arith.constant 1.000000e+00 : f32
    %120 = vector.broadcast %cst_41 : f32 to vector<8x128xf32>
    %121 = arith.addf %120, %119 : vector<8x128xf32>
    %122 = arith.divf %120, %121 : vector<8x128xf32>
    %123 = vector.extract_strided_slice %112 {offsets = [0, 128], sizes = [8, 128], strides = [1, 1]} : vector<8x384xf32> to vector<8x128xf32>
    %124 = vector.extract_strided_slice %114 {offsets = [0, 128], sizes = [8, 128], strides = [1, 1]} : vector<8x384xf32> to vector<8x128xf32>
    %125 = arith.addf %123, %124 : vector<8x128xf32>
    %126 = arith.negf %125 : vector<8x128xf32>
    %127 = math.exp %126 : vector<8x128xf32>
    %cst_42 = arith.constant 1.000000e+00 : f32
    %128 = vector.broadcast %cst_42 : f32 to vector<8x128xf32>
    %129 = arith.addf %128, %127 : vector<8x128xf32>
    %130 = arith.divf %128, %129 : vector<8x128xf32>
    %131 = vector.extract_strided_slice %112 {offsets = [0, 256], sizes = [8, 128], strides = [1, 1]} : vector<8x384xf32> to vector<8x128xf32>
    %132 = vector.extract_strided_slice %114 {offsets = [0, 256], sizes = [8, 128], strides = [1, 1]} : vector<8x384xf32> to vector<8x128xf32>
    %133 = arith.addf %132, %12 : vector<8x128xf32>
    %134 = arith.mulf %122, %133 : vector<8x128xf32>
    %135 = arith.addf %131, %134 : vector<8x128xf32>
    %136 = math.tanh %135 : vector<8x128xf32>
    %cst_43 = arith.constant 1.000000e+00 : f32
    %137 = vector.broadcast %cst_43 : f32 to vector<8x128xf32>
    %138 = arith.subf %137, %130 : vector<8x128xf32>
    %139 = arith.mulf %138, %136 : vector<8x128xf32>
    %140 = arith.mulf %130, %109 : vector<8x128xf32>
    %141 = arith.addf %139, %140 : vector<8x128xf32>
    %c4_i32 = arith.constant 4 : i32
    %c0_44 = arith.constant 0 : index
    %c0_45 = arith.constant 0 : index
    %142 = vector.load %arg10[%c0_44, %c0_45] : memref<8x128xf32, #tpu.memory_space<vmem>>, vector<8x128xf32>
    tpu.vector_store %arg10[%c0_44, %c0_45], %141 {strides = array<i32>} : memref<8x128xf32, #tpu.memory_space<vmem>>, vector<8x128xf32>,
    %c1_i32_46 = arith.constant 1 : i32
    %143 = arith.cmpi eq, %arg0, %c1_i32_46 : i32
    %144 = arith.extui %143 : i1 to i32
    %c0_i32_47 = arith.constant 0 : i32
    %145 = arith.cmpi ne, %144, %c0_i32_47 : i32
    scf.if %145 {
      %c0_48 = arith.constant 0 : index
      %c0_49 = arith.constant 0 : index
      %146 = vector.load %arg6[%c0_48, %c0_49] : memref<128x128xf32, #tpu.memory_space<vmem>>, vector<128x128xf32>
      %cst_50 = arith.constant dense<0.000000e+00> : vector<8x128xf32>
      %147 = tpu.matmul %141, %146, %cst_50 {dimension_numbers = #tpu.dot_dimension_numbers<[1], [0], [0], [1], [0, 0, 1, 1], [], []>} : vector<8x128xf32>, vector<128x128xf32>, vector<8x128xf32> -> vector<8x128xf32>
      %c0_51 = arith.constant 0 : index
      %c0_52 = arith.constant 0 : index
      %148 = vector.load %arg7[%c0_51, %c0_52] : memref<1x128xf32, #tpu.memory_space<vmem>>, vector<1x128xf32>
      %149 = vector.broadcast %148 : vector<1x128xf32> to vector<8x128xf32>
      %150 = arith.addf %147, %149 : vector<8x128xf32>
      %151 = arith.negf %150 : vector<8x128xf32>
      %152 = math.exp %151 : vector<8x128xf32>
      %cst_53 = arith.constant 1.000000e+00 : f32
      %153 = vector.broadcast %cst_53 : f32 to vector<8x128xf32>
      %154 = arith.addf %153, %152 : vector<8x128xf32>
      %155 = arith.divf %153, %154 : vector<8x128xf32>
      %c0_54 = arith.constant 0 : index
      %c0_55 = arith.constant 0 : index
      %156 = vector.load %arg8[%c0_54, %c0_55] : memref<8x128xf32, #tpu.memory_space<vmem>>, vector<8x128xf32>
      tpu.vector_store %arg8[%c0_54, %c0_55], %155 {strides = array<i32>} : memref<8x128xf32, #tpu.memory_space<vmem>>, vector<8x128xf32>,
    } else {
    }
    return
  }
  func.func @transform_0(%arg0: i32) -> (i32, i32) {
    %c0_i32 = arith.constant 0 : i32
    %c0_i32_0 = arith.constant 0 : i32
    return %arg0, %c0_i32 : i32, i32
  }
  func.func @transform_1(%arg0: i32) -> (i32, i32) {
    %c0_i32 = arith.constant 0 : i32
    %c0_i32_0 = arith.constant 0 : i32
    %c0_i32_1 = arith.constant 0 : i32
    return %c0_i32, %c0_i32_0 : i32, i32
  }
  func.func @transform_2(%arg0: i32) -> (i32, i32) {
    %c0_i32 = arith.constant 0 : i32
    %c0_i32_0 = arith.constant 0 : i32
    %c0_i32_1 = arith.constant 0 : i32
    return %c0_i32, %c0_i32_0 : i32, i32
  }
  func.func @transform_3(%arg0: i32) -> (i32, i32) {
    %c0_i32 = arith.constant 0 : i32
    %c0_i32_0 = arith.constant 0 : i32
    %c0_i32_1 = arith.constant 0 : i32
    return %c0_i32, %c0_i32_0 : i32, i32
  }
  func.func @transform_4(%arg0: i32) -> (i32, i32) {
    %c0_i32 = arith.constant 0 : i32
    %c0_i32_0 = arith.constant 0 : i32
    %c0_i32_1 = arith.constant 0 : i32
    return %c0_i32, %c0_i32_0 : i32, i32
  }
  func.func @transform_5(%arg0: i32) -> (i32, i32) {
    %c0_i32 = arith.constant 0 : i32
    %c0_i32_0 = arith.constant 0 : i32
    %c0_i32_1 = arith.constant 0 : i32
    return %c0_i32, %c0_i32_0 : i32, i32
  }
  func.func @transform_6(%arg0: i32) -> (i32, i32) {
    %c0_i32 = arith.constant 0 : i32
    %c0_i32_0 = arith.constant 0 : i32
    %c0_i32_1 = arith.constant 0 : i32
    return %c0_i32, %c0_i32_0 : i32, i32
  }
  func.func @transform_7(%arg0: i32) -> (i32, i32) {
    %c0_i32 = arith.constant 0 : i32
    %c0_i32_0 = arith.constant 0 : i32
    %c0_i32_1 = arith.constant 0 : i32
    return %c0_i32, %c0_i32_0 : i32, i32
  }
}

</mosaic_0001>

<llo_original>
// kernel: tpu_custom_call.1
$region0: #{tpu_custom_call.1}
  #allocation0 [shape = 'u32[]', space=smem, size = 0x4, offset = 0x4, fixed_abs, tag = 'smem constant byte address 0x4 - core index']
  #allocation1 [shape = 'u32[72,128]{1,0:T(1,128)}', space=vmem, size = 0x9000, scoped, tag = 'internal scratch']
  #allocation2 [shape = 'f32[32,384]{1,0:T(8,128)}', space=vmem, size = 0xc000, scoped, tag = 'scratch operand']
  #allocation3 [shape = 'f32[8,128]{1,0:T(8,128)}', space=vmem, size = 0x1000, scoped, tag = 'scratch operand']
  %s0 = inlined_call_operand.vmem [shape: f32[64,4], index: 0, kind: input, shape index: {}]
  %s1 = inlined_call_operand.vmem [shape: f32[4,384], index: 1, kind: input, shape index: {}]
  %s2 = inlined_call_operand.hbm [shape: f32[128,384], index: 2, kind: input, shape index: {}]
  %s3 = inlined_call_operand.vmem [shape: f32[1,384], index: 3, kind: input, shape index: {}]
  %s4 = inlined_call_operand.vmem [shape: f32[1,128], index: 4, kind: input, shape index: {}]
  %s5 = inlined_call_operand.hbm [shape: f32[128,128], index: 5, kind: input, shape index: {}]
  %s6 = inlined_call_operand.vmem [shape: f32[1,128], index: 6, kind: input, shape index: {}]
  %s7 = inlined_call_operand.hbm [shape: f32[8,128], index: 7, kind: output, shape index: {}]
  %s8 = sld [smem:[#allocation0]]
  $region77: #{tpu_custom_call.1} parent=0
    _
  %s10 = ssub.s32 1, %s8
  %s11 = scalar_select 0, %s10, %s8
  $region1: #{tpu_custom_call.1} parent=0
    #allocation4 [shape = 'u8[196608]{0}', space=vmem, size = 0x30000, scoped, tag = 'input window, operand 2, single buffered']
    #allocation5 [shape = 's32[2]{0}', space=sflag, size = 0x8, scoped, tag = 'scoped memory for tpu_custom_call.1']
    #allocation6 [shape = 's32[2]{0}', space=sflag, size = 0x8, scoped, tag = 'scoped memory for tpu_custom_call.1']
    #allocation7 [shape = 'u8[65536]{0}', space=vmem, size = 0x10000, scoped, tag = 'input window, operand 5, single buffered']
    #allocation8 [shape = 's32[1]{0}', space=sflag, size = 0x4, scoped, tag = 'scoped memory for tpu_custom_call.1']
    #allocation9 [shape = 'u8[4096]{0}', space=vmem, size = 0x1000, scoped, tag = 'output window, operand 0, single buffered']
    %12 = vsyncpa [#allocation5], 0
    %13 = vsyncpa [#allocation8], 0
    %14 = vsyncpa [#allocation6], 0
    loop: start=0, step=1, limit=4
    $region2: #{tpu_custom_call.1} parent=1 // loop_pre_header
      _
    $region3: #{tpu_custom_call.1} parent=1 // loop_header
      %s16 = sphi 0, %s20
      %p17 = scmp.ge.s32.totalorder %s16, 4
      %s26 = sphi 0, %s28
      %s29 = sphi 0, %s26
      %s30 = sphi 0, %s29
      %s46 = sphi 0, %s30
      %s50 = sphi 0, %s50
      %s52 = sphi 0, %s50
      %s53 = sphi 0, %s52
      %s67 = sphi 0, %s53
      %s71 = sphi 0, %s71
      %s73 = sphi 0, %s71
      %s74 = sphi 0, %s73
      %s88 = sphi 0, %s74
      %s92 = sphi 0, %s92
      %s94 = sphi 0, %s92
      %s95 = sphi 0, %s94
      %s109 = sphi 0, %s95
      %s113 = sphi 0, %s113
      %s115 = sphi 0, %s113
      %s116 = sphi 0, %s115
      %s130 = sphi 0, %s116
      %s134 = sphi 0, %s134
      %s136 = sphi 0, %s134
      %s137 = sphi 0, %s136
      %s151 = sphi 0, %s137
      %s155 = sphi 0, %s155
      %s157 = sphi 0, %s155
      %s158 = sphi 0, %s157
      %s172 = sphi 0, %s158
      %s176 = sphi 0, %s176
      %s178 = sphi 0, %s176
      %s179 = sphi 0, %s178
      %s193 = sphi 0, %s179
    $region4: #{tpu_custom_call.1} parent=1 // loop_header_branch
      %19 = sbr.rel (%p17) target = $region8
    $region5: #{tpu_custom_call.1} parent=1 // loop_body
      %s21 = ssub.s32 %s16, 1
      %s22 = ssub.s32 %s16, 2
      %s23 = sadd.s32 %s16, 1
      %s24 = ssub.s32 %s16, %s23
      %p25 = scmp.eq.s32.totalorder %s24, 0
      %s27 = sadd.s32 %s26, 1
      %s28 = scalar_select %p25, %s26, %s27
      %p31 = pneg %p25
      %p32 = scmp.eq.s32.totalorder %s16, 1
      %p33 = por %p31, %p32
      %p34 = scmp.ne.s32.totalorder %s26, %s29
      %p35 = scmp.eq.s32.totalorder %s16, 0
      %p36 = por %p34, %p35
      %p37 = scmp.ne.s32.totalorder %s26, %s29
      %p38 = scmp.eq.s32.totalorder %s21, 1
      %p39 = por %p37, %p38
      %p40 = scmp.ne.s32.totalorder %s29, %s30
      %p41 = scmp.eq.s32.totalorder %s21, 0
      %p42 = por %p40, %p41
      %p43 = scmp.ne.s32.totalorder %s29, %s30
      %p44 = scmp.eq.s32.totalorder %s22, 1
      %p45 = por %p43, %p44
      %p47 = scmp.ne.s32.totalorder %s30, %s46
      %p48 = scmp.eq.s32.totalorder %s22, 0
      %p49 = por %p47, %p48
      %s51 = sadd.s32 %s50, 1
      %p54 = scmp.eq.s32.totalorder %s16, 1
      %p55 = scmp.ne.s32.totalorder %s50, %s52
      %p56 = scmp.eq.s32.totalorder %s16, 0
      %p57 = por %p55, %p56
      %p58 = scmp.ne.s32.totalorder %s50, %s52
      %p59 = scmp.eq.s32.totalorder %s21, 1
      %p60 = por %p58, %p59
      %p61 = scmp.ne.s32.totalorder %s52, %s53
      %p62 = scmp.eq.s32.totalorder %s21, 0
      %p63 = por %p61, %p62
      %p64 = scmp.ne.s32.totalorder %s52, %s53
      %p65 = scmp.eq.s32.totalorder %s22, 1
      %p66 = por %p64, %p65
      %p68 = scmp.ne.s32.totalorder %s53, %s67
      %p69 = scmp.eq.s32.totalorder %s22, 0
      %p70 = por %p68, %p69
      %s72 = sadd.s32 %s71, 1
      %p75 = scmp.eq.s32.totalorder %s16, 1
      %p76 = scmp.ne.s32.totalorder %s71, %s73
      %p77 = scmp.eq.s32.totalorder %s16, 0
      %p78 = por %p76, %p77
      %p79 = scmp.ne.s32.totalorder %s71, %s73
      %p80 = scmp.eq.s32.totalorder %s21, 1
      %p81 = por %p79, %p80
      %p82 = scmp.ne.s32.totalorder %s73, %s74
      %p83 = scmp.eq.s32.totalorder %s21, 0
      %p84 = por %p82, %p83
      %p85 = scmp.ne.s32.totalorder %s73, %s74
      %p86 = scmp.eq.s32.totalorder %s22, 1
      %p87 = por %p85, %p86
      %p89 = scmp.ne.s32.totalorder %s74, %s88
      %p90 = scmp.eq.s32.totalorder %s22, 0
      %p91 = por %p89, %p90
      %s93 = sadd.s32 %s92, 1
      %p96 = scmp.eq.s32.totalorder %s16, 1
      %p97 = scmp.ne.s32.totalorder %s92, %s94
      %p98 = scmp.eq.s32.totalorder %s16, 0
      %p99 = por %p97, %p98
      %p100 = scmp.ne.s32.totalorder %s92, %s94
      %p101 = scmp.eq.s32.totalorder %s21, 1
      %p102 = por %p100, %p101
      %p103 = scmp.ne.s32.totalorder %s94, %s95
      %p104 = scmp.eq.s32.totalorder %s21, 0
      %p105 = por %p103, %p104
      %p106 = scmp.ne.s32.totalorder %s94, %s95
      %p107 = scmp.eq.s32.totalorder %s22, 1
      %p108 = por %p106, %p107
      %p110 = scmp.ne.s32.totalorder %s95, %s109
      %p111 = scmp.eq.s32.totalorder %s22, 0
      %p112 = por %p110, %p111
      %s114 = sadd.s32 %s113, 1
      %p117 = scmp.eq.s32.totalorder %s16, 1
      %p118 = scmp.ne.s32.totalorder %s113, %s115
      %p119 = scmp.eq.s32.totalorder %s16, 0
      %p120 = por %p118, %p119
      %p121 = scmp.ne.s32.totalorder %s113, %s115
      %p122 = scmp.eq.s32.totalorder %s21, 1
      %p123 = por %p121, %p122
      %p124 = scmp.ne.s32.totalorder %s115, %s116
      %p125 = scmp.eq.s32.totalorder %s21, 0
      %p126 = por %p124, %p125
      %p127 = scmp.ne.s32.totalorder %s115, %s116
      %p128 = scmp.eq.s32.totalorder %s22, 1
      %p129 = por %p127, %p128
      %p131 = scmp.ne.s32.totalorder %s116, %s130
      %p132 = scmp.eq.s32.totalorder %s22, 0
      %p133 = por %p131, %p132
      %s135 = sadd.s32 %s134, 1
      %p138 = scmp.eq.s32.totalorder %s16, 1
      %p139 = scmp.ne.s32.totalorder %s134, %s136
      %p140 = scmp.eq.s32.totalorder %s16, 0
      %p141 = por %p139, %p140
      %p142 = scmp.ne.s32.totalorder %s134, %s136
      %p143 = scmp.eq.s32.totalorder %s21, 1
      %p144 = por %p142, %p143
      %p145 = scmp.ne.s32.totalorder %s136, %s137
      %p146 = scmp.eq.s32.totalorder %s21, 0
      %p147 = por %p145, %p146
      %p148 = scmp.ne.s32.totalorder %s136, %s137
      %p149 = scmp.eq.s32.totalorder %s22, 1
      %p150 = por %p148, %p149
      %p152 = scmp.ne.s32.totalorder %s137, %s151
      %p153 = scmp.eq.s32.totalorder %s22, 0
      %p154 = por %p152, %p153
      %s156 = sadd.s32 %s155, 1
      %p159 = scmp.eq.s32.totalorder %s16, 1
      %p160 = scmp.ne.s32.totalorder %s155, %s157
      %p161 = scmp.eq.s32.totalorder %s16, 0
      %p162 = por %p160, %p161
      %p163 = scmp.ne.s32.totalorder %s155, %s157
      %p164 = scmp.eq.s32.totalorder %s21, 1
      %p165 = por %p163, %p164
      %p166 = scmp.ne.s32.totalorder %s157, %s158
      %p167 = scmp.eq.s32.totalorder %s21, 0
      %p168 = por %p166, %p167
      %p169 = scmp.ne.s32.totalorder %s157, %s158
      %p170 = scmp.eq.s32.totalorder %s22, 1
      %p171 = por %p169, %p170
      %p173 = scmp.ne.s32.totalorder %s158, %s172
      %p174 = scmp.eq.s32.totalorder %s22, 0
      %p175 = por %p173, %p174
      %s177 = sadd.s32 %s176, 1
      %p180 = scmp.eq.s32.totalorder %s16, 1
      %p181 = scmp.ne.s32.totalorder %s176, %s178
      %p182 = scmp.eq.s32.totalorder %s16, 0
      %p183 = por %p181, %p182
      %p184 = scmp.ne.s32.totalorder %s176, %s178
      %p185 = scmp.eq.s32.totalorder %s21, 1
      %p186 = por %p184, %p185
      %p187 = scmp.ne.s32.totalorder %s178, %s179
      %p188 = scmp.eq.s32.totalorder %s21, 0
      %p189 = por %p187, %p188
      %p190 = scmp.ne.s32.totalorder %s178, %s179
      %p191 = scmp.eq.s32.totalorder %s22, 1
      %p192 = por %p190, %p191
      %p194 = scmp.ne.s32.totalorder %s179, %s193
      %p195 = scmp.eq.s32.totalorder %s22, 0
      %p196 = por %p194, %p195
      %p197 = scmp.le.s32.totalorder 1, %s16
      %p198 = scmp.lt.s32.totalorder %s16, 3
      %p199 = pnand %p197, %p198
      %p200 = pneg %p199
      // Predicated region
      $region9: #{tpu_custom_call.1} parent=5 // pred_check
        _
      $region10: #{tpu_custom_call.1} parent=5 // pred_check_branch
        %202 = sbr.rel (%p199) target = $region12
      $region11: #{tpu_custom_call.1} parent=5 // pred_region
        %s203 = ssub.s32 %s16, 1
        // Predicated region
        $region13: #{tpu_custom_call.1} parent=11 // pred_check
          %p204 = pneg %p63
        $region14: #{tpu_custom_call.1} parent=11 // pred_check_branch
          %206 = sbr.rel (%p204) target = $region16
        $region15: #{tpu_custom_call.1} parent=11 // pred_region
          _
        $region16: #{tpu_custom_call.1} parent=11 // pred_fallthru
          _
        // Predicated region
        $region17: #{tpu_custom_call.1} parent=11 // pred_check
          %p207 = pneg %p84
        $region18: #{tpu_custom_call.1} parent=11 // pred_check_branch
          %209 = sbr.rel (%p207) target = $region20
        $region19: #{tpu_custom_call.1} parent=11 // pred_region
          %211 = vsyncadd [#allocation5], 0
          %s212 = sshll.u32 %s2, 4
          %s213 = int_to_ptr.hbm [resolvable:$true] %s212
          %s214 = sshll.u32 [#allocation4], 4
          %s215 = int_to_ptr.vmem [resolvable:$true] %s214
          %220 = dma.hbm_to_vmem [thread:$0]  %s213, 6144, %s215, [#allocation5], 384, 384, 24
        $region20: #{tpu_custom_call.1} parent=11 // pred_fallthru
          _
        // Predicated region
        $region21: #{tpu_custom_call.1} parent=11 // pred_check
          %p221 = pneg %p105
        $region22: #{tpu_custom_call.1} parent=11 // pred_check_branch
          %223 = sbr.rel (%p221) target = $region24
        $region23: #{tpu_custom_call.1} parent=11 // pred_region
          _
        $region24: #{tpu_custom_call.1} parent=11 // pred_fallthru
          _
        // Predicated region
        $region25: #{tpu_custom_call.1} parent=11 // pred_check
          %p224 = pneg %p126
        $region26: #{tpu_custom_call.1} parent=11 // pred_check_branch
          %226 = sbr.rel (%p224) target = $region28
        $region27: #{tpu_custom_call.1} parent=11 // pred_region
          _
        $region28: #{tpu_custom_call.1} parent=11 // pred_fallthru
          _
        // Predicated region
        $region29: #{tpu_custom_call.1} parent=11 // pred_check
          %p227 = pneg %p147
        $region30: #{tpu_custom_call.1} parent=11 // pred_check_branch
          %229 = sbr.rel (%p227) target = $region32
        $region31: #{tpu_custom_call.1} parent=11 // pred_region
          %231 = vsyncadd [#allocation8], 0
          %s232 = sshll.u32 %s5, 4
          %s233 = int_to_ptr.hbm [resolvable:$true] %s232
          %s234 = sshll.u32 [#allocation7], 4
          %s235 = int_to_ptr.vmem [resolvable:$true] %s234
          %240 = dma.hbm_to_vmem [thread:$0]  %s233, 2048, %s235, [#allocation8], 128, 128, 8
        $region32: #{tpu_custom_call.1} parent=11 // pred_fallthru
          _
        // Predicated region
        $region33: #{tpu_custom_call.1} parent=11 // pred_check
          %p241 = pneg %p168
        $region34: #{tpu_custom_call.1} parent=11 // pred_check_branch
          %243 = sbr.rel (%p241) target = $region36
        $region35: #{tpu_custom_call.1} parent=11 // pred_region
          _
        $region36: #{tpu_custom_call.1} parent=11 // pred_fallthru
          _
      $region12: #{tpu_custom_call.1} parent=5 // pred_fallthru
        _
      %p244 = scmp.lt.s32.totalorder %s16, 2
      // Predicated region
      $region37: #{tpu_custom_call.1} parent=5 // pred_check
        %p245 = pneg %p244
      $region38: #{tpu_custom_call.1} parent=5 // pred_check_branch
        %247 = sbr.rel (%p245) target = $region40
      $region39: #{tpu_custom_call.1} parent=5 // pred_region
        // Predicated region
        $region41: #{tpu_custom_call.1} parent=39 // pred_check
          %p248 = pneg %p36
        $region42: #{tpu_custom_call.1} parent=39 // pred_check_branch
          %250 = sbr.rel (%p248) target = $region44
        $region43: #{tpu_custom_call.1} parent=39 // pred_region
          %s251 = smul.u32 4, %s16
          %p252 = scmp.lt.s32.totalorder %s251, 7
          %s253 = scalar_select %p252, %s251, 7
          %s254 = smul.addr %s253, 8
          %s255 = scalar_lea.vmem %s0, %s254
          %s256 = smul.u32 4, %s16
        $region44: #{tpu_custom_call.1} parent=39 // pred_fallthru
          _
      $region40: #{tpu_custom_call.1} parent=5 // pred_fallthru
        _
      %p257 = scmp.le.s32.totalorder 1, %s16
      %p258 = scmp.lt.s32.totalorder %s16, 3
      %p259 = pnand %p257, %p258
      %p260 = pneg %p259
      // Predicated region
      $region45: #{tpu_custom_call.1} parent=5 // pred_check
        _
      $region46: #{tpu_custom_call.1} parent=5 // pred_check_branch
        %262 = sbr.rel (%p259) target = $region48
      $region47: #{tpu_custom_call.1} parent=5 // pred_region
        %s263 = ssub.s32 %s16, 1
        // Predicated region
        $region49: #{tpu_custom_call.1} parent=47 // pred_check
          %p264 = pneg %p84
        $region50: #{tpu_custom_call.1} parent=47 // pred_check_branch
          %266 = sbr.rel (%p264) target = $region52
        $region51: #{tpu_custom_call.1} parent=47 // pred_region
          %268 = dma.done [#allocation5], 6144
        $region52: #{tpu_custom_call.1} parent=47 // pred_fallthru
          _
        // Predicated region
        $region53: #{tpu_custom_call.1} parent=47 // pred_check
          %p269 = pneg %p147
        $region54: #{tpu_custom_call.1} parent=47 // pred_check_branch
          %271 = sbr.rel (%p269) target = $region56
        $region55: #{tpu_custom_call.1} parent=47 // pred_region
          %273 = dma.done [#allocation8], 2048
        $region56: #{tpu_custom_call.1} parent=47 // pred_fallthru
          _
        %s274 = smul.u32 4, %s21
        %p275 = scmp.lt.s32.totalorder %s274, 7
        %s276 = scalar_select %p275, %s274, 7
        %s277 = smul.addr %s276, 8
        %s278 = scalar_lea.vmem %s0, %s277
        %p279 = pneg %p42
        %p280 = pneg %p39
        %p281 = pneg %p63
        %p282 = pneg %p60
        %p283 = pneg %p84
        %p284 = pneg %p81
        %p285 = pneg %p105
        %p286 = pneg %p102
        %p287 = pneg %p126
        %p288 = pneg %p123
        %p289 = pneg %p147
        %p290 = pneg %p144
        %p291 = pneg %p168
        %p292 = pneg %p165
        %p293 = pneg %p189
        %p294 = pneg %p186
        %s295 = smul.u32 4, %s21
        %p296 = scmp.lt.s32.totalorder %s295, 7
        %s297 = scalar_select %p296, %s295, 7
        %s298 = smul.addr %s297, 8
        %s299 = scalar_lea.vmem %s0, %s298
        %s300 = smul.u32 4, %s21
        %p301 = scmp.eq.s32.totalorder %s21, 0
        // Predicated region
        $region57: #{tpu_custom_call.1} parent=47 // pred_check
          %p302 = pneg %p301
        $region58: #{tpu_custom_call.1} parent=47 // pred_check_branch
          %304 = sbr.rel (%p302) target = $region60
        $region59: #{tpu_custom_call.1} parent=47 // pred_region
          %305 = vst [vmem:[#allocation3] sm:$0xff] 0.0
        $region60: #{tpu_custom_call.1} parent=47 // pred_fallthru
          _
        %v306 = vld [vmem:[%s299] sm:$0xff]
        %v307 = vld [vmem:[%s299 + $0x8] sm:$0xff]
        %v308 = vld [vmem:[%s299 + $0x10] sm:$0xff]
        %v309 = vld [vmem:[%s299 + $0x18] sm:$0xff]
        %v310 = vld [vmem:[%s1] sm:$0xff]
        %v311 = vld [vmem:[%s1 + $0x8] sm:$0xf]
        %v312 = vld [vmem:[%s3] sm:$0x7]
        %v314 = vperm.slane %v312, 0
        %v315 = vperm.slane %v312, 1
        %v316 = vperm.slane %v312, 2
        %322 = vst [vmem:[#allocation1] ss:$2 sm:$0xff] %v310
        %s323 = scalar_lea.vmem [#allocation1], 16
        %324 = vst [vmem:[%s323] ss:$2 sm:$0xff] %v311
        %v325 = vld.sshfl [vmem:[#allocation1] sm:$0xff pattern:$0x75316420]
        %v326 = vld.sshfl [vmem:[#allocation1 + $0x8] sm:$0xff pattern:$0x75316420]
        %v327 = vld.sshfl [vmem:[#allocation1 + $0x10] sm:$0xff pattern:$0x75316420]
        %vm328 = vcmask 31744
        %v330 = vsel %vm328, %v306, 0
        %v333 = vsel %vm328, %v307, 0
        %v336 = vsel %vm328, %v308, 0
        %v339 = vsel %vm328, %v309, 0
        %vm341 = vcmask 1043456
        %v342 = vsel %vm341, %v325, 0
        %v344 = vsel %vm341, %v326, 0
        %v346 = vsel %vm341, %v327, 0
        %348 = vmatpush.msra.mxu0 0.0
        %349 = vmatpush.msra.mxu0 0.0
        %350 = vmatpush.msra.mxu0 0.0
        %351 = vmatpush.msra.mxu0 0.0
        %352 = vmatpush.msra.mxu0 0.0
        %353 = vmatpush.msra.mxu0 0.0
        %354 = vmatpush.msra.mxu0 0.0
        %355 = vmatpush.msra.mxu0 0.0
        %356 = vmatpush.msra.mxu0 0.0
        %357 = vmatpush.msra.mxu0 0.0
        %358 = vmatpush.msra.mxu0 0.0
        %359 = vmatpush.msra.mxu0 0.0
        %360 = vmatpush.msra.mxu0 0.0
        %361 = vmatpush.msra.mxu0 0.0
        %362 = vmatpush.msra.mxu0 0.0
        %363 = vmatpush.msra.mxu0 %v342
        %364 = vmatmul.f32.gmra.mxu0 %v330
        %v365 = vpop.f32.mrf.mxu0
        %v366 = vadd.f32 %v314, %v365
        %367 = vmatmul.f32.gmra.mxu0 %v333
        %v368 = vpop.f32.mrf.mxu0
        %v369 = vadd.f32 %v314, %v368
        %370 = vmatmul.f32.gmra.mxu0 %v336
        %v371 = vpop.f32.mrf.mxu0
        %v372 = vadd.f32 %v314, %v371
        %373 = vmatmul.f32.gmra.mxu0 %v339
        %v374 = vpop.f32.mrf.mxu0
        %v375 = vadd.f32 %v314, %v374
        %376 = vdwg.mxu0
        %377 = vmatpush.msra.mxu0 0.0
        %378 = vmatpush.msra.mxu0 0.0
        %379 = vmatpush.msra.mxu0 0.0
        %380 = vmatpush.msra.mxu0 0.0
        %381 = vmatpush.msra.mxu0 0.0
        %382 = vmatpush.msra.mxu0 0.0
        %383 = vmatpush.msra.mxu0 0.0
        %384 = vmatpush.msra.mxu0 0.0
        %385 = vmatpush.msra.mxu0 0.0
        %386 = vmatpush.msra.mxu0 0.0
        %387 = vmatpush.msra.mxu0 0.0
        %388 = vmatpush.msra.mxu0 0.0
        %389 = vmatpush.msra.mxu0 0.0
        %390 = vmatpush.msra.mxu0 0.0
        %391 = vmatpush.msra.mxu0 0.0
        %392 = vmatpush.msra.mxu0 %v344
        %393 = vmatmul.f32.gmra.mxu0 %v330
        %v394 = vpop.f32.mrf.mxu0
        %v395 = vadd.f32 %v315, %v394
        %396 = vmatmul.f32.gmra.mxu0 %v333
        %v397 = vpop.f32.mrf.mxu0
        %v398 = vadd.f32 %v315, %v397
        %399 = vmatmul.f32.gmra.mxu0 %v336
        %v400 = vpop.f32.mrf.mxu0
        %v401 = vadd.f32 %v315, %v400
        %402 = vmatmul.f32.gmra.mxu0 %v339
        %v403 = vpop.f32.mrf.mxu0
        %v404 = vadd.f32 %v315, %v403
        %405 = vdwg.mxu0
        %406 = vmatpush.msra.mxu0 0.0
        %407 = vmatpush.msra.mxu0 0.0
        %408 = vmatpush.msra.mxu0 0.0
        %409 = vmatpush.msra.mxu0 0.0
        %410 = vmatpush.msra.mxu0 0.0
        %411 = vmatpush.msra.mxu0 0.0
        %412 = vmatpush.msra.mxu0 0.0
        %413 = vmatpush.msra.mxu0 0.0
        %414 = vmatpush.msra.mxu0 0.0
        %415 = vmatpush.msra.mxu0 0.0
        %416 = vmatpush.msra.mxu0 0.0
        %417 = vmatpush.msra.mxu0 0.0
        %418 = vmatpush.msra.mxu0 0.0
        %419 = vmatpush.msra.mxu0 0.0
        %420 = vmatpush.msra.mxu0 0.0
        %421 = vmatpush.msra.mxu0 %v346
        %422 = vmatmul.f32.gmra.mxu0 %v330
        %v423 = vpop.f32.mrf.mxu0
        %v424 = vadd.f32 %v316, %v423
        %425 = vmatmul.f32.gmra.mxu0 %v333
        %v426 = vpop.f32.mrf.mxu0
        %v427 = vadd.f32 %v316, %v426
        %428 = vmatmul.f32.gmra.mxu0 %v336
        %v429 = vpop.f32.mrf.mxu0
        %v430 = vadd.f32 %v316, %v429
        %431 = vmatmul.f32.gmra.mxu0 %v339
        %v432 = vpop.f32.mrf.mxu0
        %v433 = vadd.f32 %v316, %v432
        %434 = vdwg.mxu0
        %435 = vst [vmem:[#allocation2] sm:$0xff] %v366
        %436 = vst [vmem:[#allocation2 + $0x8] sm:$0xff] %v395
        %437 = vst [vmem:[#allocation2 + $0x10] sm:$0xff] %v424
        %438 = vst [vmem:[#allocation2 + $0x18] sm:$0xff] %v369
        %439 = vst [vmem:[#allocation2 + $0x20] sm:$0xff] %v398
        %440 = vst [vmem:[#allocation2 + $0x28] sm:$0xff] %v427
        %441 = vst [vmem:[#allocation2 + $0x30] sm:$0xff] %v372
        %442 = vst [vmem:[#allocation2 + $0x38] sm:$0xff] %v401
        %443 = vst [vmem:[#allocation2 + $0x40] sm:$0xff] %v430
        %444 = vst [vmem:[#allocation2 + $0x48] sm:$0xff] %v375
        %445 = vst [vmem:[#allocation2 + $0x50] sm:$0xff] %v404
        %446 = vst [vmem:[#allocation2 + $0x58] sm:$0xff] %v433
        %v447 = vld [vmem:[%s4] sm:$0x1]
        %v449 = vperm.slane %v447, 0
        %v451 = vld [vmem:[#allocation3] sm:$0xff]
        %v452 = vld [vmem:[#allocation2] sm:$0xff]
        %v453 = vld [vmem:[#allocation2 + $0x8] sm:$0xff]
        %v454 = vld [vmem:[#allocation2 + $0x10] sm:$0xff]
        %v455 = vld [vmem:[#allocation4] sm:$0xff]
        %v456 = vld [vmem:[#allocation4 + $0x8] sm:$0xff]
        %v457 = vld [vmem:[#allocation4 + $0x10] sm:$0xff]
        %v458 = vld [vmem:[#allocation4 + $0x18] sm:$0xff]
        %v459 = vld [vmem:[#allocation4 + $0x20] sm:$0xff]
        %v460 = vld [vmem:[#allocation4 + $0x28] sm:$0xff]
        %v461 = vld [vmem:[#allocation4 + $0x30] sm:$0xff]
        %v462 = vld [vmem:[#allocation4 + $0x38] sm:$0xff]
        %v463 = vld [vmem:[#allocation4 + $0x40] sm:$0xff]
        %v464 = vld [vmem:[#allocation4 + $0x48] sm:$0xff]
        %v465 = vld [vmem:[#allocation4 + $0x50] sm:$0xff]
        %v466 = vld [vmem:[#allocation4 + $0x58] sm:$0xff]
        %v467 = vld [vmem:[#allocation4 + $0x60] sm:$0xff]
        %v468 = vld [vmem:[#allocation4 + $0x68] sm:$0xff]
        %v469 = vld [vmem:[#allocation4 + $0x70] sm:$0xff]
        %v470 = vld [vmem:[#allocation4 + $0x78] sm:$0xff]
        %v471 = vld [vmem:[#allocation4 + $0x80] sm:$0xff]
        %v472 = vld [vmem:[#allocation4 + $0x88] sm:$0xff]
        %v473 = vld [vmem:[#allocation4 + $0x90] sm:$0xff]
        %v474 = vld [vmem:[#allocation4 + $0x98] sm:$0xff]
        %v475 = vld [vmem:[#allocation4 + $0xa0] sm:$0xff]
        %v476 = vld [vmem:[#allocation4 + $0xa8] sm:$0xff]
        %v477 = vld [vmem:[#allocation4 + $0xb0] sm:$0xff]
        %v478 = vld [vmem:[#allocation4 + $0xb8] sm:$0xff]
        %v479 = vld [vmem:[#allocation4 + $0xc0] sm:$0xff]
        %v480 = vld [vmem:[#allocation4 + $0xc8] sm:$0xff]
        %v481 = vld [vmem:[#allocation4 + $0xd0] sm:$0xff]
        %v482 = vld [vmem:[#allocation4 + $0xd8] sm:$0xff]
        %v483 = vld [vmem:[#allocation4 + $0xe0] sm:$0xff]
        %v484 = vld [vmem:[#allocation4 + $0xe8] sm:$0xff]
        %v485 = vld [vmem:[#allocation4 + $0xf0] sm:$0xff]
        %v486 = vld [vmem:[#allocation4 + $0xf8] sm:$0xff]
        %v487 = vld [vmem:[#allocation4 + $0x100] sm:$0xff]
        %v488 = vld [vmem:[#allocation4 + $0x108] sm:$0xff]
        %v489 = vld [vmem:[#allocation4 + $0x110] sm:$0xff]
        %v490 = vld [vmem:[#allocation4 + $0x118] sm:$0xff]
        %v491 = vld [vmem:[#allocation4 + $0x120] sm:$0xff]
        %v492 = vld [vmem:[#allocation4 + $0x128] sm:$0xff]
        %v493 = vld [vmem:[#allocation4 + $0x130] sm:$0xff]
        %v494 = vld [vmem:[#allocation4 + $0x138] sm:$0xff]
        %v495 = vld [vmem:[#allocation4 + $0x140] sm:$0xff]
        %v496 = vld [vmem:[#allocation4 + $0x148] sm:$0xff]
        %v497 = vld [vmem:[#allocation4 + $0x150] sm:$0xff]
        %v498 = vld [vmem:[#allocation4 + $0x158] sm:$0xff]
        %v499 = vld [vmem:[#allocation4 + $0x160] sm:$0xff]
        %v500 = vld [vmem:[#allocation4 + $0x168] sm:$0xff]
        %v501 = vld [vmem:[#allocation4 + $0x170] sm:$0xff]
        %v502 = vld [vmem:[#allocation4 + $0x178] sm:$0xff]
        %503 = vmatpush.msra.mxu0 %v500
        %504 = vmatpush.msra.mxu0 %v497
        %505 = vmatpush.msra.mxu0 %v494
        %506 = vmatpush.msra.mxu0 %v491
        %507 = vmatpush.msra.mxu0 %v488
        %508 = vmatpush.msra.mxu0 %v485
        %509 = vmatpush.msra.mxu0 %v482
        %510 = vmatpush.msra.mxu0 %v479
        %511 = vmatpush.msra.mxu0 %v476
        %512 = vmatpush.msra.mxu0 %v473
        %513 = vmatpush.msra.mxu0 %v470
        %514 = vmatpush.msra.mxu0 %v467
        %515 = vmatpush.msra.mxu0 %v464
        %516 = vmatpush.msra.mxu0 %v461
        %517 = vmatpush.msra.mxu0 %v458
        %518 = vmatpush.msra.mxu0 %v455
        %519 = vmatmul.f32.gmra.mxu0 %v451
        %v520 = vpop.f32.mrf.mxu0
        %v521 = vadd.f32 0.0, %v520
        %522 = vdwg.mxu0
        %523 = vmatpush.msra.mxu0 %v501
        %524 = vmatpush.msra.mxu0 %v498
        %525 = vmatpush.msra.mxu0 %v495
        %526 = vmatpush.msra.mxu0 %v492
        %527 = vmatpush.msra.mxu0 %v489
        %528 = vmatpush.msra.mxu0 %v486
        %529 = vmatpush.msra.mxu0 %v483
        %530 = vmatpush.msra.mxu0 %v480
        %531 = vmatpush.msra.mxu0 %v477
        %532 = vmatpush.msra.mxu0 %v474
        %533 = vmatpush.msra.mxu0 %v471
        %534 = vmatpush.msra.mxu0 %v468
        %535 = vmatpush.msra.mxu0 %v465
        %536 = vmatpush.msra.mxu0 %v462
        %537 = vmatpush.msra.mxu0 %v459
        %538 = vmatpush.msra.mxu0 %v456
        %539 = vmatmul.f32.gmra.mxu0 %v451
        %v540 = vpop.f32.mrf.mxu0
        %v541 = vadd.f32 0.0, %v540
        %542 = vdwg.mxu0
        %543 = vmatpush.msra.mxu0 %v502
        %544 = vmatpush.msra.mxu0 %v499
        %545 = vmatpush.msra.mxu0 %v496
        %546 = vmatpush.msra.mxu0 %v493
        %547 = vmatpush.msra.mxu0 %v490
        %548 = vmatpush.msra.mxu0 %v487
        %549 = vmatpush.msra.mxu0 %v484
        %550 = vmatpush.msra.mxu0 %v481
        %551 = vmatpush.msra.mxu0 %v478
        %552 = vmatpush.msra.mxu0 %v475
        %553 = vmatpush.msra.mxu0 %v472
        %554 = vmatpush.msra.mxu0 %v469
        %555 = vmatpush.msra.mxu0 %v466
        %556 = vmatpush.msra.mxu0 %v463
        %557 = vmatpush.msra.mxu0 %v460
        %558 = vmatpush.msra.mxu0 %v457
        %559 = vmatmul.f32.gmra.mxu0 %v451
        %v560 = vpop.f32.mrf.mxu0
        %v561 = vadd.f32 0.0, %v560
        %562 = vdwg.mxu0
        %v563 = vadd.f32 %v452, %v521
        %v564 = vxor.u32 %v563, 2147483648
        %v565 = vmul.f32 %v564, 1.442695
        %v566 = vpow.pop %v565
        %v567 = vadd.f32 %v566, 1.0
        %v568 = vrcp.pop %v567
        %v569 = vmul.f32 %v567, %v568
        %v570 = vsub.f32 1.0, %v569
        %v571 = vmul.f32 %v568, %v570
        %v572 = vadd.f32 %v568, %v571
        %vm573 = vweird.f32 %v567
        %vm574 = vweird.f32 %v568
        %vm575 = vmor %vm573, %vm574
        %v576 = vsel %vm575, %v568, %v572
        %v577 = vand.u32 2147483647, %v567
        %vm578 = vcmp.eq.f32.partialorder %v577, 8.507059e+37
        %v579 = vand.u32 %v567, 2147483648
        %v580 = vor.u32 1.1754944e-38, %v579
        %v581 = vsel %vm578, %v580, %v576
        %v582 = vmul.f32 1.0, %v581
        %v583 = vadd.f32 %v453, %v541
        %v584 = vxor.u32 %v583, 2147483648
        %v585 = vmul.f32 %v584, 1.442695
        %v586 = vpow.pop %v585
        %v587 = vadd.f32 %v586, 1.0
        %v588 = vrcp.pop %v587
        %v589 = vmul.f32 %v587, %v588
        %v590 = vsub.f32 1.0, %v589
        %v591 = vmul.f32 %v588, %v590
        %v592 = vadd.f32 %v588, %v591
        %vm593 = vweird.f32 %v587
        %vm594 = vweird.f32 %v588
        %vm595 = vmor %vm593, %vm594
        %v596 = vsel %vm595, %v588, %v592
        %v597 = vand.u32 2147483647, %v587
        %vm598 = vcmp.eq.f32.partialorder %v597, 8.507059e+37
        %v599 = vand.u32 %v587, 2147483648
        %v600 = vor.u32 1.1754944e-38, %v599
        %v601 = vsel %vm598, %v600, %v596
        %v602 = vmul.f32 1.0, %v601
        %v603 = vadd.f32 %v561, %v449
        %v604 = vmul.f32 %v582, %v603
        %v605 = vadd.f32 %v454, %v604
        %v606 = vtanh.pop %v605
        %v607 = vsub.f32 1.0, %v602
        %v608 = vmul.f32 %v607, %v606
        %v609 = vmul.f32 %v602, %v451
        %v610 = vadd.f32 %v608, %v609
        %v611 = vld [vmem:[#allocation2 + $0x18] sm:$0xff]
        %v612 = vld [vmem:[#allocation2 + $0x20] sm:$0xff]
        %v613 = vld [vmem:[#allocation2 + $0x28] sm:$0xff]
        %614 = vmatpush.msra.mxu0 %v500
        %615 = vmatpush.msra.mxu0 %v497
        %616 = vmatpush.msra.mxu0 %v494
        %617 = vmatpush.msra.mxu0 %v491
        %618 = vmatpush.msra.mxu0 %v488
        %619 = vmatpush.msra.mxu0 %v485
        %620 = vmatpush.msra.mxu0 %v482
        %621 = vmatpush.msra.mxu0 %v479
        %622 = vmatpush.msra.mxu0 %v476
        %623 = vmatpush.msra.mxu0 %v473
        %624 = vmatpush.msra.mxu0 %v470
        %625 = vmatpush.msra.mxu0 %v467
        %626 = vmatpush.msra.mxu0 %v464
        %627 = vmatpush.msra.mxu0 %v461
        %628 = vmatpush.msra.mxu0 %v458
        %629 = vmatpush.msra.mxu0 %v455
        %630 = vmatmul.f32.gmra.mxu0 %v610
        %v631 = vpop.f32.mrf.mxu0
        %v632 = vadd.f32 0.0, %v631
        %633 = vdwg.mxu0
        %634 = vmatpush.msra.mxu0 %v501
        %635 = vmatpush.msra.mxu0 %v498
        %636 = vmatpush.msra.mxu0 %v495
        %637 = vmatpush.msra.mxu0 %v492
        %638 = vmatpush.msra.mxu0 %v489
        %639 = vmatpush.msra.mxu0 %v486
        %640 = vmatpush.msra.mxu0 %v483
        %641 = vmatpush.msra.mxu0 %v480
        %642 = vmatpush.msra.mxu0 %v477
        %643 = vmatpush.msra.mxu0 %v474
        %644 = vmatpush.msra.mxu0 %v471
        %645 = vmatpush.msra.mxu0 %v468
        %646 = vmatpush.msra.mxu0 %v465
        %647 = vmatpush.msra.mxu0 %v462
        %648 = vmatpush.msra.mxu0 %v459
        %649 = vmatpush.msra.mxu0 %v456
        %650 = vmatmul.f32.gmra.mxu0 %v610
        %v651 = vpop.f32.mrf.mxu0
        %v652 = vadd.f32 0.0, %v651
        %653 = vdwg.mxu0
        %654 = vmatpush.msra.mxu0 %v502
        %655 = vmatpush.msra.mxu0 %v499
        %656 = vmatpush.msra.mxu0 %v496
        %657 = vmatpush.msra.mxu0 %v493
        %658 = vmatpush.msra.mxu0 %v490
        %659 = vmatpush.msra.mxu0 %v487
        %660 = vmatpush.msra.mxu0 %v484
        %661 = vmatpush.msra.mxu0 %v481
        %662 = vmatpush.msra.mxu0 %v478
        %663 = vmatpush.msra.mxu0 %v475
        %664 = vmatpush.msra.mxu0 %v472
        %665 = vmatpush.msra.mxu0 %v469
        %666 = vmatpush.msra.mxu0 %v466
        %667 = vmatpush.msra.mxu0 %v463
        %668 = vmatpush.msra.mxu0 %v460
        %669 = vmatpush.msra.mxu0 %v457
        %670 = vmatmul.f32.gmra.mxu0 %v610
        %v671 = vpop.f32.mrf.mxu0
        %v672 = vadd.f32 0.0, %v671
        %673 = vdwg.mxu0
        %v674 = vadd.f32 %v611, %v632
        %v675 = vxor.u32 %v674, 2147483648
        %v676 = vmul.f32 %v675, 1.442695
        %v677 = vpow.pop %v676
        %v678 = vadd.f32 %v677, 1.0
        %v679 = vrcp.pop %v678
        %v680 = vmul.f32 %v678, %v679
        %v681 = vsub.f32 1.0, %v680
        %v682 = vmul.f32 %v679, %v681
        %v683 = vadd.f32 %v679, %v682
        %vm684 = vweird.f32 %v678
        %vm685 = vweird.f32 %v679
        %vm686 = vmor %vm684, %vm685
        %v687 = vsel %vm686, %v679, %v683
        %v688 = vand.u32 2147483647, %v678
        %vm689 = vcmp.eq.f32.partialorder %v688, 8.507059e+37
        %v690 = vand.u32 %v678, 2147483648
        %v691 = vor.u32 1.1754944e-38, %v690
        %v692 = vsel %vm689, %v691, %v687
        %v693 = vmul.f32 1.0, %v692
        %v694 = vadd.f32 %v612, %v652
        %v695 = vxor.u32 %v694, 2147483648
        %v696 = vmul.f32 %v695, 1.442695
        %v697 = vpow.pop %v696
        %v698 = vadd.f32 %v697, 1.0
        %v699 = vrcp.pop %v698
        %v700 = vmul.f32 %v698, %v699
        %v701 = vsub.f32 1.0, %v700
        %v702 = vmul.f32 %v699, %v701
        %v703 = vadd.f32 %v699, %v702
        %vm704 = vweird.f32 %v698
        %vm705 = vweird.f32 %v699
        %vm706 = vmor %vm704, %vm705
        %v707 = vsel %vm706, %v699, %v703
        %v708 = vand.u32 2147483647, %v698
        %vm709 = vcmp.eq.f32.partialorder %v708, 8.507059e+37
        %v710 = vand.u32 %v698, 2147483648
        %v711 = vor.u32 1.1754944e-38, %v710
        %v712 = vsel %vm709, %v711, %v707
        %v713 = vmul.f32 1.0, %v712
        %v714 = vadd.f32 %v672, %v449
        %v715 = vmul.f32 %v693, %v714
        %v716 = vadd.f32 %v613, %v715
        %v717 = vtanh.pop %v716
        %v718 = vsub.f32 1.0, %v713
        %v719 = vmul.f32 %v718, %v717
        %v720 = vmul.f32 %v713, %v610
        %v721 = vadd.f32 %v719, %v720
        %v722 = vld [vmem:[#allocation2 + $0x30] sm:$0xff]
        %v723 = vld [vmem:[#allocation2 + $0x38] sm:$0xff]
        %v724 = vld [vmem:[#allocation2 + $0x40] sm:$0xff]
        %725 = vmatpush.msra.mxu0 %v500
        %726 = vmatpush.msra.mxu0 %v497
        %727 = vmatpush.msra.mxu0 %v494
        %728 = vmatpush.msra.mxu0 %v491
        %729 = vmatpush.msra.mxu0 %v488
        %730 = vmatpush.msra.mxu0 %v485
        %731 = vmatpush.msra.mxu0 %v482
        %732 = vmatpush.msra.mxu0 %v479
        %733 = vmatpush.msra.mxu0 %v476
        %734 = vmatpush.msra.mxu0 %v473
        %735 = vmatpush.msra.mxu0 %v470
        %736 = vmatpush.msra.mxu0 %v467
        %737 = vmatpush.msra.mxu0 %v464
        %738 = vmatpush.msra.mxu0 %v461
        %739 = vmatpush.msra.mxu0 %v458
        %740 = vmatpush.msra.mxu0 %v455
        %741 = vmatmul.f32.gmra.mxu0 %v721
        %v742 = vpop.f32.mrf.mxu0
        %v743 = vadd.f32 0.0, %v742
        %744 = vdwg.mxu0
        %745 = vmatpush.msra.mxu0 %v501
        %746 = vmatpush.msra.mxu0 %v498
        %747 = vmatpush.msra.mxu0 %v495
        %748 = vmatpush.msra.mxu0 %v492
        %749 = vmatpush.msra.mxu0 %v489
        %750 = vmatpush.msra.mxu0 %v486
        %751 = vmatpush.msra.mxu0 %v483
        %752 = vmatpush.msra.mxu0 %v480
        %753 = vmatpush.msra.mxu0 %v477
        %754 = vmatpush.msra.mxu0 %v474
        %755 = vmatpush.msra.mxu0 %v471
        %756 = vmatpush.msra.mxu0 %v468
        %757 = vmatpush.msra.mxu0 %v465
        %758 = vmatpush.msra.mxu0 %v462
        %759 = vmatpush.msra.mxu0 %v459
        %760 = vmatpush.msra.mxu0 %v456
        %761 = vmatmul.f32.gmra.mxu0 %v721
        %v762 = vpop.f32.mrf.mxu0
        %v763 = vadd.f32 0.0, %v762
        %764 = vdwg.mxu0
        %765 = vmatpush.msra.mxu0 %v502
        %766 = vmatpush.msra.mxu0 %v499
        %767 = vmatpush.msra.mxu0 %v496
        %768 = vmatpush.msra.mxu0 %v493
        %769 = vmatpush.msra.mxu0 %v490
        %770 = vmatpush.msra.mxu0 %v487
        %771 = vmatpush.msra.mxu0 %v484
        %772 = vmatpush.msra.mxu0 %v481
        %773 = vmatpush.msra.mxu0 %v478
        %774 = vmatpush.msra.mxu0 %v475
        %775 = vmatpush.msra.mxu0 %v472
        %776 = vmatpush.msra.mxu0 %v469
        %777 = vmatpush.msra.mxu0 %v466
        %778 = vmatpush.msra.mxu0 %v463
        %779 = vmatpush.msra.mxu0 %v460
        %780 = vmatpush.msra.mxu0 %v457
        %781 = vmatmul.f32.gmra.mxu0 %v721
        %v782 = vpop.f32.mrf.mxu0
        %v783 = vadd.f32 0.0, %v782
        %784 = vdwg.mxu0
        %v785 = vadd.f32 %v722, %v743
        %v786 = vxor.u32 %v785, 2147483648
        %v787 = vmul.f32 %v786, 1.442695
        %v788 = vpow.pop %v787
        %v789 = vadd.f32 %v788, 1.0
        %v790 = vrcp.pop %v789
        %v791 = vmul.f32 %v789, %v790
        %v792 = vsub.f32 1.0, %v791
        %v793 = vmul.f32 %v790, %v792
        %v794 = vadd.f32 %v790, %v793
        %vm795 = vweird.f32 %v789
        %vm796 = vweird.f32 %v790
        %vm797 = vmor %vm795, %vm796
        %v798 = vsel %vm797, %v790, %v794
        %v799 = vand.u32 2147483647, %v789
        %vm800 = vcmp.eq.f32.partialorder %v799, 8.507059e+37
        %v801 = vand.u32 %v789, 2147483648
        %v802 = vor.u32 1.1754944e-38, %v801
        %v803 = vsel %vm800, %v802, %v798
        %v804 = vmul.f32 1.0, %v803
        %v805 = vadd.f32 %v723, %v763
        %v806 = vxor.u32 %v805, 2147483648
        %v807 = vmul.f32 %v806, 1.442695
        %v808 = vpow.pop %v807
        %v809 = vadd.f32 %v808, 1.0
        %v810 = vrcp.pop %v809
        %v811 = vmul.f32 %v809, %v810
        %v812 = vsub.f32 1.0, %v811
        %v813 = vmul.f32 %v810, %v812
        %v814 = vadd.f32 %v810, %v813
        %vm815 = vweird.f32 %v809
        %vm816 = vweird.f32 %v810
        %vm817 = vmor %vm815, %vm816
        %v818 = vsel %vm817, %v810, %v814
        %v819 = vand.u32 2147483647, %v809
        %vm820 = vcmp.eq.f32.partialorder %v819, 8.507059e+37
        %v821 = vand.u32 %v809, 2147483648
        %v822 = vor.u32 1.1754944e-38, %v821
        %v823 = vsel %vm820, %v822, %v818
        %v824 = vmul.f32 1.0, %v823
        %v825 = vadd.f32 %v783, %v449
        %v826 = vmul.f32 %v804, %v825
        %v827 = vadd.f32 %v724, %v826
        %v828 = vtanh.pop %v827
        %v829 = vsub.f32 1.0, %v824
        %v830 = vmul.f32 %v829, %v828
        %v831 = vmul.f32 %v824, %v721
        %v832 = vadd.f32 %v830, %v831
        %v833 = vld [vmem:[#allocation2 + $0x48] sm:$0xff]
        %v834 = vld [vmem:[#allocation2 + $0x50] sm:$0xff]
        %v835 = vld [vmem:[#allocation2 + $0x58] sm:$0xff]
        %836 = vmatpush.msra.mxu0 %v500
        %837 = vmatpush.msra.mxu0 %v497
        %838 = vmatpush.msra.mxu0 %v494
        %839 = vmatpush.msra.mxu0 %v491
        %840 = vmatpush.msra.mxu0 %v488
        %841 = vmatpush.msra.mxu0 %v485
        %842 = vmatpush.msra.mxu0 %v482
        %843 = vmatpush.msra.mxu0 %v479
        %844 = vmatpush.msra.mxu0 %v476
        %845 = vmatpush.msra.mxu0 %v473
        %846 = vmatpush.msra.mxu0 %v470
        %847 = vmatpush.msra.mxu0 %v467
        %848 = vmatpush.msra.mxu0 %v464
        %849 = vmatpush.msra.mxu0 %v461
        %850 = vmatpush.msra.mxu0 %v458
        %851 = vmatpush.msra.mxu0 %v455
        %852 = vmatmul.f32.gmra.mxu0 %v832
        %v853 = vpop.f32.mrf.mxu0
        %v854 = vadd.f32 0.0, %v853
        %855 = vdwg.mxu0
        %856 = vmatpush.msra.mxu0 %v501
        %857 = vmatpush.msra.mxu0 %v498
        %858 = vmatpush.msra.mxu0 %v495
        %859 = vmatpush.msra.mxu0 %v492
        %860 = vmatpush.msra.mxu0 %v489
        %861 = vmatpush.msra.mxu0 %v486
        %862 = vmatpush.msra.mxu0 %v483
        %863 = vmatpush.msra.mxu0 %v480
        %864 = vmatpush.msra.mxu0 %v477
        %865 = vmatpush.msra.mxu0 %v474
        %866 = vmatpush.msra.mxu0 %v471
        %867 = vmatpush.msra.mxu0 %v468
        %868 = vmatpush.msra.mxu0 %v465
        %869 = vmatpush.msra.mxu0 %v462
        %870 = vmatpush.msra.mxu0 %v459
        %871 = vmatpush.msra.mxu0 %v456
        %872 = vmatmul.f32.gmra.mxu0 %v832
        %v873 = vpop.f32.mrf.mxu0
        %v874 = vadd.f32 0.0, %v873
        %875 = vdwg.mxu0
        %876 = vmatpush.msra.mxu0 %v502
        %877 = vmatpush.msra.mxu0 %v499
        %878 = vmatpush.msra.mxu0 %v496
        %879 = vmatpush.msra.mxu0 %v493
        %880 = vmatpush.msra.mxu0 %v490
        %881 = vmatpush.msra.mxu0 %v487
        %882 = vmatpush.msra.mxu0 %v484
        %883 = vmatpush.msra.mxu0 %v481
        %884 = vmatpush.msra.mxu0 %v478
        %885 = vmatpush.msra.mxu0 %v475
        %886 = vmatpush.msra.mxu0 %v472
        %887 = vmatpush.msra.mxu0 %v469
        %888 = vmatpush.msra.mxu0 %v466
        %889 = vmatpush.msra.mxu0 %v463
        %890 = vmatpush.msra.mxu0 %v460
        %891 = vmatpush.msra.mxu0 %v457
        %892 = vmatmul.f32.gmra.mxu0 %v832
        %v893 = vpop.f32.mrf.mxu0
        %v894 = vadd.f32 0.0, %v893
        %895 = vdwg.mxu0
        %v896 = vadd.f32 %v833, %v854
        %v897 = vxor.u32 %v896, 2147483648
        %v898 = vmul.f32 %v897, 1.442695
        %v899 = vpow.pop %v898
        %v900 = vadd.f32 %v899, 1.0
        %v901 = vrcp.pop %v900
        %v902 = vmul.f32 %v900, %v901
        %v903 = vsub.f32 1.0, %v902
        %v904 = vmul.f32 %v901, %v903
        %v905 = vadd.f32 %v901, %v904
        %vm906 = vweird.f32 %v900
        %vm907 = vweird.f32 %v901
        %vm908 = vmor %vm906, %vm907
        %v909 = vsel %vm908, %v901, %v905
        %v910 = vand.u32 2147483647, %v900
        %vm911 = vcmp.eq.f32.partialorder %v910, 8.507059e+37
        %v912 = vand.u32 %v900, 2147483648
        %v913 = vor.u32 1.1754944e-38, %v912
        %v914 = vsel %vm911, %v913, %v909
        %v915 = vmul.f32 1.0, %v914
        %v916 = vadd.f32 %v834, %v874
        %v917 = vxor.u32 %v916, 2147483648
        %v918 = vmul.f32 %v917, 1.442695
        %v919 = vpow.pop %v918
        %v920 = vadd.f32 %v919, 1.0
        %v921 = vrcp.pop %v920
        %v922 = vmul.f32 %v920, %v921
        %v923 = vsub.f32 1.0, %v922
        %v924 = vmul.f32 %v921, %v923
        %v925 = vadd.f32 %v921, %v924
        %vm926 = vweird.f32 %v920
        %vm927 = vweird.f32 %v921
        %vm928 = vmor %vm926, %vm927
        %v929 = vsel %vm928, %v921, %v925
        %v930 = vand.u32 2147483647, %v920
        %vm931 = vcmp.eq.f32.partialorder %v930, 8.507059e+37
        %v932 = vand.u32 %v920, 2147483648
        %v933 = vor.u32 1.1754944e-38, %v932
        %v934 = vsel %vm931, %v933, %v929
        %v935 = vmul.f32 1.0, %v934
        %v936 = vadd.f32 %v894, %v449
        %v937 = vmul.f32 %v915, %v936
        %v938 = vadd.f32 %v835, %v937
        %v939 = vtanh.pop %v938
        %v940 = vsub.f32 1.0, %v935
        %v941 = vmul.f32 %v940, %v939
        %v942 = vmul.f32 %v935, %v832
        %v943 = vadd.f32 %v941, %v942
        %944 = vst [vmem:[#allocation3] sm:$0xff] %v943
        %p945 = scmp.eq.s32.totalorder %s21, 1
        // Predicated region
        $region61: #{tpu_custom_call.1} parent=47 // pred_check
          %p946 = pneg %p945
        $region62: #{tpu_custom_call.1} parent=47 // pred_check_branch
          %948 = sbr.rel (%p946) target = $region64
        $region63: #{tpu_custom_call.1} parent=47 // pred_region
          %v949 = vld [vmem:[#allocation7] sm:$0xff]
          %v950 = vld [vmem:[#allocation7 + $0x8] sm:$0xff]
          %v951 = vld [vmem:[#allocation7 + $0x10] sm:$0xff]
          %v952 = vld [vmem:[#allocation7 + $0x18] sm:$0xff]
          %v953 = vld [vmem:[#allocation7 + $0x20] sm:$0xff]
          %v954 = vld [vmem:[#allocation7 + $0x28] sm:$0xff]
          %v955 = vld [vmem:[#allocation7 + $0x30] sm:$0xff]
          %v956 = vld [vmem:[#allocation7 + $0x38] sm:$0xff]
          %v957 = vld [vmem:[#allocation7 + $0x40] sm:$0xff]
          %v958 = vld [vmem:[#allocation7 + $0x48] sm:$0xff]
          %v959 = vld [vmem:[#allocation7 + $0x50] sm:$0xff]
          %v960 = vld [vmem:[#allocation7 + $0x58] sm:$0xff]
          %v961 = vld [vmem:[#allocation7 + $0x60] sm:$0xff]
          %v962 = vld [vmem:[#allocation7 + $0x68] sm:$0xff]
          %v963 = vld [vmem:[#allocation7 + $0x70] sm:$0xff]
          %v964 = vld [vmem:[#allocation7 + $0x78] sm:$0xff]
          %v965 = vld [vmem:[%s6] sm:$0x1]
          %v967 = vperm.slane %v965, 0
          %969 = vmatpush.msra.mxu0 %v964
          %970 = vmatpush.msra.mxu0 %v963
          %971 = vmatpush.msra.mxu0 %v962
          %972 = vmatpush.msra.mxu0 %v961
          %973 = vmatpush.msra.mxu0 %v960
          %974 = vmatpush.msra.mxu0 %v959
          %975 = vmatpush.msra.mxu0 %v958
          %976 = vmatpush.msra.mxu0 %v957
          %977 = vmatpush.msra.mxu0 %v956
          %978 = vmatpush.msra.mxu0 %v955
          %979 = vmatpush.msra.mxu0 %v954
          %980 = vmatpush.msra.mxu0 %v953
          %981 = vmatpush.msra.mxu0 %v952
          %982 = vmatpush.msra.mxu0 %v951
          %983 = vmatpush.msra.mxu0 %v950
          %984 = vmatpush.msra.mxu0 %v949
          %985 = vmatmul.f32.gmra.mxu0 %v943
          %v986 = vpop.f32.mrf.mxu0
          %v987 = vadd.f32 %v967, %v986
          %988 = vdwg.mxu0
          %v989 = vxor.u32 %v987, 2147483648
          %v990 = vmul.f32 %v989, 1.442695
          %v991 = vpow.pop %v990
          %v992 = vadd.f32 %v991, 1.0
          %v993 = vrcp.pop %v992
          %v994 = vmul.f32 %v992, %v993
          %v995 = vsub.f32 1.0, %v994
          %v996 = vmul.f32 %v993, %v995
          %v997 = vadd.f32 %v993, %v996
          %vm998 = vweird.f32 %v992
          %vm999 = vweird.f32 %v993
          %vm1000 = vmor %vm998, %vm999
          %v1001 = vsel %vm1000, %v993, %v997
          %v1002 = vand.u32 2147483647, %v992
          %vm1003 = vcmp.eq.f32.partialorder %v1002, 8.507059e+37
          %v1004 = vand.u32 %v992, 2147483648
          %v1005 = vor.u32 1.1754944e-38, %v1004
          %v1006 = vsel %vm1003, %v1005, %v1001
          %v1007 = vmul.f32 1.0, %v1006
          %1008 = vst [vmem:[#allocation9] sm:$0xff] %v1007
        $region64: #{tpu_custom_call.1} parent=47 // pred_fallthru
          _
        // Predicated region
        $region65: #{tpu_custom_call.1} parent=47 // pred_check
          %p1009 = pneg %p186
        $region66: #{tpu_custom_call.1} parent=47 // pred_check_branch
          %1011 = sbr.rel (%p1009) target = $region68
        $region67: #{tpu_custom_call.1} parent=47 // pred_region
          %1013 = vsyncadd [#allocation6], 0
          %s1015 = sshll.u32 [#allocation9], 4
          %s1016 = int_to_ptr.vmem [resolvable:$true] %s1015
          %s1017 = sshll.u32 %s7, 4
          %s1018 = int_to_ptr.hbm [resolvable:$true] %s1017
          %1020 = dma.vmem_to_hbm [thread:$0]  %s1016, 128, %s1018, [#allocation6]
        $region68: #{tpu_custom_call.1} parent=47 // pred_fallthru
          _
        // Predicated region
        $region69: #{tpu_custom_call.1} parent=47 // pred_check
          %p1021 = pneg %p186
        $region70: #{tpu_custom_call.1} parent=47 // pred_check_branch
          %1023 = sbr.rel (%p1021) target = $region72
        $region71: #{tpu_custom_call.1} parent=47 // pred_region
          %1025 = dma.done [#allocation6], 128
        $region72: #{tpu_custom_call.1} parent=47 // pred_fallthru
          _
      $region48: #{tpu_custom_call.1} parent=5 // pred_fallthru
        _
      %p1026 = scmp.le.s32.totalorder 2, %s16
      // Predicated region
      $region73: #{tpu_custom_call.1} parent=5 // pred_check
        %p1027 = pneg %p1026
      $region74: #{tpu_custom_call.1} parent=5 // pred_check_branch
        %1029 = sbr.rel (%p1027) target = $region76
      $region75: #{tpu_custom_call.1} parent=5 // pred_region
        %s1030 = ssub.s32 %s16, 2
      $region76: #{tpu_custom_call.1} parent=5 // pred_fallthru
        _
    $region6: #{tpu_custom_call.1} parent=1 // loop_footer
      %s20 = sadd.s32 1, %s16
    $region7: #{tpu_custom_call.1} parent=1 // loop_footer_branch
      %15 = sbr.rel target = $region3
    $region8: #{tpu_custom_call.1} parent=1 // loop_exit
      _
    %1031 = vsyncpa [#allocation5], 1
    %s1032 = scalar_lea.sflag [#allocation5], 1
    %1033 = vsyncpa %s1032, 1
    %1034 = vsyncpa [#allocation8], 1
    %1035 = vsyncpa [#allocation6], 1
    %s1036 = scalar_lea.sflag [#allocation6], 1
    %1037 = vsyncpa %s1036, 1

</llo_original>
